<compile_context>
chip_gen: v5e
topology: v5e:2x2
jax: 0.10.0
libtpu: 0.0.40
codegen_flags: <defaults>
</compile_context>

<pallas_src>
import functools

import jax
import jax.numpy as jnp
from jax.experimental import pallas as pl
from jax.experimental.pallas import tpu as pltpu

# ---- module hyper-parameters (from the PyTorch source) ----------------------
RANK_1 = 64
RANK_2 = 32
ALPHA_1 = 16
ALPHA_2 = 16
SCALING_1 = RANK_1 / ALPHA_1          # 4.0  (module computes rank_1 / alpha_1)
SCALING_2 = RANK_2 / ALPHA_1          # 2.0  (module divides by alpha_1 here too)

# Default inference flags from the module -> forward == base_layer(x).
IS_FIRST_USED = False
IS_SECOND_USED = False

COMPUTE_DTYPE = jnp.bfloat16


# -----------------------------------------------------------------------------
# Pallas kernels
# -----------------------------------------------------------------------------
def _base_linear_kernel(x_ref, w_ref, b_ref, o_ref, acc_ref):
    # Tiled y = x @ W + b with f32 accumulation over the K grid axis.
    k = pl.program_id(2)

    @pl.when(k == 0)
    def _init():
        acc_ref[...] = jnp.zeros_like(acc_ref)

    acc_ref[...] += jnp.dot(x_ref[...], w_ref[...],
                            preferred_element_type=jnp.float32)

    @pl.when(k == pl.num_programs(2) - 1)
    def _finalize():
        o_ref[...] = (acc_ref[...] + b_ref[...]).astype(o_ref.dtype)


def _base_plus_lora1_kernel(scaling_1, x_ref, w_ref, b_ref, a_ref, bl_ref,
                            o_ref, acc_ref, t_ref):
    # Intended first-adapter path: base(x) + scaling_1 * lora_B(lora_A(x)).
    # The lora_A matmul is fused into the same K loop (x is read once);
    # scaling_1 is folded into the rank-wide intermediate t.
    k = pl.program_id(2)

    @pl.when(k == 0)
    def _init():
        acc_ref[...] = jnp.zeros_like(acc_ref)
        t_ref[...] = jnp.zeros_like(t_ref)

    x = x_ref[...]                                            # (tm, tk) bf16
    acc_ref[...] += jnp.dot(x, w_ref[...],
                            preferred_element_type=jnp.float32)
    t_ref[...] += jnp.dot(x, a_ref[...],
                          preferred_element_type=jnp.float32)  # (tm, R)

    @pl.when(k == pl.num_programs(2) - 1)
    def _finalize():
        t = (scaling_1 * t_ref[...]).astype(bl_ref.dtype)      # scale rank-wide
        y = acc_ref[...] + b_ref[...] + jnp.dot(
            t, bl_ref[...], preferred_element_type=jnp.float32)
        o_ref[...] = y.astype(o_ref.dtype)


# -----------------------------------------------------------------------------
# Helpers
# -----------------------------------------------------------------------------
def _round_up(x, m):
    return ((x + m - 1) // m) * m


def _pick_tile(dim_pad, max_tile):
    # dim_pad is a multiple of 128; return the largest multiple of 128
    # <= max_tile that divides dim_pad.
    t = max(128, (min(max_tile, dim_pad) // 128) * 128)
    while dim_pad % t != 0:
        t -= 128
    return t


def prepare_params(params, *, compute_dtype=COMPUTE_DTYPE):
    """One-time transpose / cast / zero-pad of weights (no per-call .T)."""
    w = params["base_w"]                      # (out_dim, in_dim)
    b = params["base_b"]                      # (out_dim,)
    out_dim, in_dim = w.shape
    K = _round_up(in_dim, 128)
    N = _round_up(out_dim, 128)

    w_t = jnp.pad(w.T.astype(compute_dtype),
                  ((0, K - in_dim), (0, N - out_dim)))          # (K, N)
    b_p = jnp.pad(b.astype(jnp.float32).reshape(1, out_dim),
                  ((0, 0), (0, N - out_dim)))                   # (1, N)

    # First adapter, rank padded to 128 for a lane-dense intermediate.
    r1 = params["lora_A"].shape[0]
    R = _round_up(r1, 128)
    a_t = jnp.pad(params["lora_A"].T.astype(compute_dtype),
                  ((0, K - in_dim), (0, R - r1)))               # (K, R)
    bl_t = jnp.pad(params["lora_B"].T.astype(compute_dtype),
                   ((0, R - r1), (0, N - out_dim)))             # (R, N)

    return {"w_t": w_t, "b": b_p, "a_t": a_t, "bl_t": bl_t,
            "in_dim": in_dim, "out_dim": out_dim}


# -----------------------------------------------------------------------------
# Wrapper
# -----------------------------------------------------------------------------
def cascaded_lora_forward(x, prepared, *, use_first=IS_FIRST_USED,
                          use_second=IS_SECOND_USED,
                          tile_m=128, tile_n=256, tile_k=512):
    """x: (batch, seq, in_dim) float32. Returns (batch, seq, out_dim) float32."""
    # TODO(synk): the second-adapter inference branch references self.W2 which
    # is never defined in the PyTorch module (AttributeError) -> not executable,
    # so it is not implemented here.
    del use_second

    batch, seq, in_dim = x.shape
    out_dim = prepared["out_dim"]
    assert prepared["in_dim"] == in_dim
    w_t, bias = prepared["w_t"], prepared["b"]
    K_pad, N_pad = w_t.shape
    M = batch * seq

    tm = min(tile_m, _round_up(M, 16))        # bf16 needs >= 16 sublanes
    M_pad = _round_up(M, tm)
    tk = _pick_tile(K_pad, tile_k)
    tn = _pick_tile(N_pad, tile_n)
    grid = (M_pad // tm, N_pad // tn, K_pad // tk)

    x2d = x.reshape(M, in_dim).astype(w_t.dtype)
    x2d = jnp.pad(x2d, ((0, M_pad - M), (0, K_pad - in_dim)))

    out_shape = jax.ShapeDtypeStruct((M_pad, N_pad), jnp.float32)
    out_spec = pl.BlockSpec((tm, tn), lambda i, j, k: (i, j))
    base_specs = [
        pl.BlockSpec((tm, tk), lambda i, j, k: (i, k)),     # x tile
        pl.BlockSpec((tk, tn), lambda i, j, k: (k, j)),     # W^T tile
        pl.BlockSpec((1, tn), lambda i, j, k: (0, j)),      # bias tile
    ]
    cparams = pltpu.CompilerParams(
        dimension_semantics=("parallel", "parallel", "arbitrary"))

    if not use_first:
        y2d = pl.pallas_call(
            _base_linear_kernel,
            out_shape=out_shape,
            grid_spec=pltpu.PrefetchScalarGridSpec(
                num_scalar_prefetch=0,
                grid=grid,
                in_specs=base_specs,
                out_specs=out_spec,
                scratch_shapes=[pltpu.VMEM((tm, tn), jnp.float32)],
            ),
            compiler_params=cparams,
        )(x2d, w_t, bias)
    else:
        a_t, bl_t = prepared["a_t"], prepared["bl_t"]
        R = a_t.shape[1]
        y2d = pl.pallas_call(
            functools.partial(_base_plus_lora1_kernel, SCALING_1),
            out_shape=out_shape,
            grid_spec=pltpu.PrefetchScalarGridSpec(
                num_scalar_prefetch=0,
                grid=grid,
                in_specs=base_specs + [
                    pl.BlockSpec((tk, R), lambda i, j, k: (k, 0)),   # A^T tile
                    pl.BlockSpec((R, tn), lambda i, j, k: (0, j)),   # B^T tile
                ],
                out_specs=out_spec,
                scratch_shapes=[pltpu.VMEM((tm, tn), jnp.float32),
                                pltpu.VMEM((tm, R), jnp.float32)],
            ),
            compiler_params=cparams,
        )(x2d, w_t, bias, a_t, bl_t)

    return y2d[:M, :out_dim].reshape(batch, seq, out_dim)


# -----------------------------------------------------------------------------
# Deterministic parameter initialization (mirrors __init__ shapes)
# -----------------------------------------------------------------------------
def init_params(key, in_dim, out_dim, rank_1=RANK_1, rank_2=RANK_2):
    k_base_w, k_base_b, k_a, k_a1 = jax.random.split(key, 4)
    std1 = 1.0 / jnp.sqrt(jnp.float32(rank_1))
    std2 = 1.0 / jnp.sqrt(jnp.float32(rank_2))
    return {
        # base_layer: Linear(in_dim, out_dim) weight (out_dim, in_dim) + bias
        "base_w": jax.random.normal(k_base_w, (out_dim, in_dim), jnp.float32) * 0.02,
        "base_b": jax.random.normal(k_base_b, (out_dim,), jnp.float32) * 0.01,
        # first adapter
        "lora_A": jax.random.normal(k_a, (rank_1, in_dim), jnp.float32) * std1,
        "lora_B": jnp.zeros((out_dim, rank_1), jnp.float32),
        # second (cascaded) adapter — initialized per __init__, unused in forward
        "lora_A1": jax.random.normal(k_a1, (rank_2, in_dim), jnp.float32) * std2,
        "lora_A2": jnp.zeros((rank_1, rank_2), jnp.float32),
        "lora_B1": jnp.zeros((rank_2, rank_1), jnp.float32),
        "lora_B2": jnp.zeros((out_dim, rank_2), jnp.float32) * std2,  # as in source
    }


# -----------------------------------------------------------------------------
# Pure-JAX reference (replicates the kernel's bf16 operand casts exactly)
# -----------------------------------------------------------------------------
def _bf16(a):
    return a.astype(jnp.bfloat16).astype(jnp.float32)


def reference_forward(x, params, *, use_first=False):
    b, s, in_dim = x.shape
    x2d = _bf16(x.reshape(-1, in_dim))
    w = _bf16(params["base_w"])
    y = x2d @ w.T + params["base_b"].astype(jnp.float32)
    if use_first:
        a = _bf16(params["lora_A"])
        bl = _bf16(params["lora_B"])
        t = x2d @ a.T
        t = _bf16(SCALING_1 * t)
        y = y + t @ bl.T
    return y.reshape(b, s, -1)


if __name__ == "__main__":
    key = jax.random.PRNGKey(0)
    k_x, k_p, k_x2, k_p2, k_b = jax.random.split(key, 5)

    # ---- small shape consistent with the module (default flags: base only) --
    batch, seq, in_dim, out_dim = 2, 8, 32, 32
    x = jax.random.normal(k_x, (batch, seq, in_dim), jnp.float32)
    params = init_params(k_p, in_dim, out_dim)
    prepared = prepare_params(params)

    y = jax.block_until_ready(cascaded_lora_forward(x, prepared))
    ref = reference_forward(x, params, use_first=False)
    assert y.shape == (batch, seq, out_dim)
    assert jnp.allclose(y, ref, atol=2e-3, rtol=2e-3), "base path mismatch"

    # ---- intended first-adapter path (static flag; off by default) ----------
    params_l = dict(params)
    params_l["lora_B"] = 0.02 * jax.random.normal(
        k_b, (out_dim, RANK_1), jnp.float32)
    prepared_l = prepare_params(params_l)
    y1 = jax.block_until_ready(
        cascaded_lora_forward(x, prepared_l, use_first=True))
    ref1 = reference_forward(x, params_l, use_first=True)
    assert jnp.allclose(y1, ref1, atol=2e-3, rtol=2e-3), "lora path mismatch"

    # ---- larger shape: exercises M/N/K tiling, padding and K accumulation ---
    batch2, seq2, in2, out2 = 2, 100, 1024, 384
    x2 = jax.random.normal(k_x2, (batch2, seq2, in2), jnp.float32)
    params2 = init_params(k_p2, in2, out2)
    prepared2 = prepare_params(params2)
    y2 = jax.block_until_ready(cascaded_lora_forward(x2, prepared2))
    ref2 = reference_forward(x2, params2, use_first=False)
    assert jnp.allclose(y2, ref2, atol=5e-3, rtol=5e-3), "tiled base mismatch"

    print("KERNEL_OK")
</pallas_src>

<mosaic_0001>
module attributes {stable_mosaic.version = 11 : i64} {
  func.func @_base_linear_kernel(%arg0: i32, %arg1: i32, %arg2: i32, %arg3: memref<16x128xbf16, #tpu.memory_space<vmem>>, %arg4: memref<128x128xbf16, #tpu.memory_space<vmem>>, %arg5: memref<1x128xf32, #tpu.memory_space<vmem>>, %arg6: memref<16x128xf32, #tpu.memory_space<vmem>>, %arg7: memref<16x128xf32, #tpu.memory_space<vmem>>) attributes {dimension_semantics = [#tpu.dimension_semantics<parallel>, #tpu.dimension_semantics<parallel>, #tpu.dimension_semantics<arbitrary>], iteration_bounds = array<i64: 1, 1, 1>, scalar_prefetch = 0 : i64, scratch_operands = 1 : i64, tpu.core_type = #tpu.core_type<tc>, window_params = [{transform_indices = @transform_0, window_bounds = array<i64: 16, 128>}, {transform_indices = @transform_1, window_bounds = array<i64: 128, 128>}, {transform_indices = @transform_2, window_bounds = array<i64: 1, 128>}, {transform_indices = @transform_3, window_bounds = array<i64: 16, 128>}]} {
    %c0_i32 = arith.constant 0 : i32
    %0 = arith.cmpi eq, %arg2, %c0_i32 : i32
    %1 = arith.extui %0 : i1 to i32
    %c0_i32_0 = arith.constant 0 : i32
    %2 = arith.cmpi ne, %1, %c0_i32_0 : i32
    scf.if %2 {
      %cst_10 = arith.constant 0.000000e+00 : f32
      %12 = vector.broadcast %cst_10 : f32 to vector<16x128xf32>
      %c0_11 = arith.constant 0 : index
      %c0_12 = arith.constant 0 : index
      %13 = vector.load %arg7[%c0_11, %c0_12] : memref<16x128xf32, #tpu.memory_space<vmem>>, vector<16x128xf32>
      tpu.vector_store %arg7[%c0_11, %c0_12], %12 {strides = array<i32>} : memref<16x128xf32, #tpu.memory_space<vmem>>, vector<16x128xf32>,
    } else {
    }
    %c0 = arith.constant 0 : index
    %c0_1 = arith.constant 0 : index
    %3 = vector.load %arg7[%c0, %c0_1] : memref<16x128xf32, #tpu.memory_space<vmem>>, vector<16x128xf32>
    %c0_2 = arith.constant 0 : index
    %c0_3 = arith.constant 0 : index
    %4 = vector.load %arg3[%c0_2, %c0_3] : memref<16x128xbf16, #tpu.memory_space<vmem>>, vector<16x128xbf16>
    %c0_4 = arith.constant 0 : index
    %c0_5 = arith.constant 0 : index
    %5 = vector.load %arg4[%c0_4, %c0_5] : memref<128x128xbf16, #tpu.memory_space<vmem>>, vector<128x128xbf16>
    %cst = arith.constant dense<0.000000e+00> : vector<16x128xf32>
    %6 = tpu.matmul %4, %5, %cst {dimension_numbers = #tpu.dot_dimension_numbers<[1], [0], [0], [1], [0, 0, 1, 1], [], []>} : vector<16x128xbf16>, vector<128x128xbf16>, vector<16x128xf32> -> vector<16x128xf32>
    %7 = arith.addf %3, %6 : vector<16x128xf32>
    %c0_6 = arith.constant 0 : index
    %c0_7 = arith.constant 0 : index
    %8 = vector.load %arg7[%c0_6, %c0_7] : memref<16x128xf32, #tpu.memory_space<vmem>>, vector<16x128xf32>
    tpu.vector_store %arg7[%c0_6, %c0_7], %7 {strides = array<i32>} : memref<16x128xf32, #tpu.memory_space<vmem>>, vector<16x128xf32>,
    %c0_i32_8 = arith.constant 0 : i32
    %9 = arith.cmpi eq, %arg2, %c0_i32_8 : i32
    %10 = arith.extui %9 : i1 to i32
    %c0_i32_9 = arith.constant 0 : i32
    %11 = arith.cmpi ne, %10, %c0_i32_9 : i32
    scf.if %11 {
      %c0_10 = arith.constant 0 : index
      %c0_11 = arith.constant 0 : index
      %12 = vector.load %arg7[%c0_10, %c0_11] : memref<16x128xf32, #tpu.memory_space<vmem>>, vector<16x128xf32>
      %c0_12 = arith.constant 0 : index
      %c0_13 = arith.constant 0 : index
      %13 = vector.load %arg5[%c0_12, %c0_13] : memref<1x128xf32, #tpu.memory_space<vmem>>, vector<1x128xf32>
      %14 = vector.broadcast %13 : vector<1x128xf32> to vector<16x128xf32>
      %15 = arith.addf %12, %14 : vector<16x128xf32>
      %c0_14 = arith.constant 0 : index
      %c0_15 = arith.constant 0 : index
      %16 = vector.load %arg6[%c0_14, %c0_15] : memref<16x128xf32, #tpu.memory_space<vmem>>, vector<16x128xf32>
      tpu.vector_store %arg6[%c0_14, %c0_15], %15 {strides = array<i32>} : memref<16x128xf32, #tpu.memory_space<vmem>>, vector<16x128xf32>,
    } else {
    }
    return
  }
  func.func @transform_0(%arg0: i32, %arg1: i32, %arg2: i32) -> (i32, i32) {
    %c0_i32 = arith.constant 0 : i32
    return %arg0, %arg2 : i32, i32
  }
  func.func @transform_1(%arg0: i32, %arg1: i32, %arg2: i32) -> (i32, i32) {
    %c0_i32 = arith.constant 0 : i32
    return %arg2, %arg1 : i32, i32
  }
  func.func @transform_2(%arg0: i32, %arg1: i32, %arg2: i32) -> (i32, i32) {
    %c0_i32 = arith.constant 0 : i32
    %c0_i32_0 = arith.constant 0 : i32
    return %c0_i32, %arg1 : i32, i32
  }
  func.func @transform_3(%arg0: i32, %arg1: i32, %arg2: i32) -> (i32, i32) {
    %c0_i32 = arith.constant 0 : i32
    return %arg0, %arg1 : i32, i32
  }
}

</mosaic_0001>

<llo_original>
// kernel: tpu_custom_call.1
$region0: #{tpu_custom_call.1}
  #allocation0 [shape = 'u32[]', space=smem, size = 0x4, offset = 0x4, fixed_abs, tag = 'smem constant byte address 0x4 - core index']
  #allocation1 [shape = 'u32[72,128]{1,0:T(1,128)}', space=vmem, size = 0x9000, scoped, tag = 'internal scratch']
  #allocation2 [shape = 'f32[16,128]{1,0:T(8,128)}', space=vmem, size = 0x2000, scoped, tag = 'scratch operand']
  %s0 = inlined_call_operand.hbm [shape: bf16[16,128], index: 0, kind: input, shape index: {}]
  %s1 = inlined_call_operand.hbm [shape: bf16[128,128], index: 1, kind: input, shape index: {}]
  %s2 = inlined_call_operand.vmem [shape: f32[1,128], index: 2, kind: input, shape index: {}]
  %s3 = inlined_call_operand.hbm [shape: f32[16,128], index: 3, kind: output, shape index: {}]
  %s4 = sld [smem:[#allocation0]]
  $region38: #{tpu_custom_call.1} parent=0
    _
  %s6 = ssub.s32 1, %s4
  %s7 = scalar_select 0, %s6, %s4
  $region1: #{tpu_custom_call.1} parent=0
    #allocation3 [shape = 'u8[4096]{0}', space=vmem, size = 0x1000, scoped, tag = 'input window, operand 0, single buffered']
    #allocation4 [shape = 's32[1]{0}', space=sflag, size = 0x4, scoped, tag = 'scoped memory for tpu_custom_call.1']
    #allocation5 [shape = 's32[1]{0}', space=sflag, size = 0x4, scoped, tag = 'scoped memory for tpu_custom_call.1']
    #allocation6 [shape = 'u8[32768]{0}', space=vmem, size = 0x8000, scoped, tag = 'input window, operand 1, single buffered']
    #allocation7 [shape = 's32[1]{0}', space=sflag, size = 0x4, scoped, tag = 'scoped memory for tpu_custom_call.1']
    #allocation8 [shape = 'u8[8192]{0}', space=vmem, size = 0x2000, scoped, tag = 'output window, operand 0, single buffered']
    %8 = vsyncpa [#allocation4], 0
    %9 = vsyncpa [#allocation7], 0
    %10 = vsyncpa [#allocation5], 0
    // Predicated region
    $region2: #{tpu_custom_call.1} parent=1 // pred_check
      _
    $region3: #{tpu_custom_call.1} parent=1 // pred_check_branch
      %12 = sbr.rel (0) target = $region5
    $region4: #{tpu_custom_call.1} parent=1 // pred_region
      %14 = vsyncadd [#allocation4], 0
      %s15 = sshll.u32 %s0, 4
      %s16 = int_to_ptr.hbm [resolvable:$true] %s15
      %s17 = sshll.u32 [#allocation3], 4
      %s18 = int_to_ptr.vmem [resolvable:$true] %s17
      %23 = dma.hbm_to_vmem [thread:$0]  %s16, 128, %s18, [#allocation4], 64, 64, 4
    $region5: #{tpu_custom_call.1} parent=1 // pred_fallthru
      _
    // Predicated region
    $region6: #{tpu_custom_call.1} parent=1 // pred_check
      _
    $region7: #{tpu_custom_call.1} parent=1 // pred_check_branch
      %25 = sbr.rel (0) target = $region9
    $region8: #{tpu_custom_call.1} parent=1 // pred_region
      %27 = vsyncadd [#allocation7], 0
      %s28 = sshll.u32 %s1, 4
      %s29 = int_to_ptr.hbm [resolvable:$true] %s28
      %s30 = sshll.u32 [#allocation6], 4
      %s31 = int_to_ptr.vmem [resolvable:$true] %s30
      %36 = dma.hbm_to_vmem [thread:$0]  %s29, 1024, %s31, [#allocation7], 64, 64, 4
    $region9: #{tpu_custom_call.1} parent=1 // pred_fallthru
      _
    // Predicated region
    $region10: #{tpu_custom_call.1} parent=1 // pred_check
      _
    $region11: #{tpu_custom_call.1} parent=1 // pred_check_branch
      %38 = sbr.rel (0) target = $region13
    $region12: #{tpu_custom_call.1} parent=1 // pred_region
      _
    $region13: #{tpu_custom_call.1} parent=1 // pred_fallthru
      _
    // Predicated region
    $region14: #{tpu_custom_call.1} parent=1 // pred_check
      _
    $region15: #{tpu_custom_call.1} parent=1 // pred_check_branch
      %40 = sbr.rel (0) target = $region17
    $region16: #{tpu_custom_call.1} parent=1 // pred_region
      %42 = dma.done [#allocation4], 128
    $region17: #{tpu_custom_call.1} parent=1 // pred_fallthru
      _
    // Predicated region
    $region18: #{tpu_custom_call.1} parent=1 // pred_check
      _
    $region19: #{tpu_custom_call.1} parent=1 // pred_check_branch
      %44 = sbr.rel (0) target = $region21
    $region20: #{tpu_custom_call.1} parent=1 // pred_region
      %46 = dma.done [#allocation7], 1024
    $region21: #{tpu_custom_call.1} parent=1 // pred_fallthru
      _
    %p47 = scmp.eq.s32.totalorder 0, 0
    // Predicated region
    $region22: #{tpu_custom_call.1} parent=1 // pred_check
      %p48 = pneg %p47
    $region23: #{tpu_custom_call.1} parent=1 // pred_check_branch
      %50 = sbr.rel (%p48) target = $region25
    $region24: #{tpu_custom_call.1} parent=1 // pred_region
      %51 = vst [vmem:[#allocation2] sm:$0xff] 0.0
      %52 = vst [vmem:[#allocation2 + $0x8] sm:$0xff] 0.0
    $region25: #{tpu_custom_call.1} parent=1 // pred_fallthru
      _
    %v53 = vld [vmem:[#allocation2] sm:$0xff]
    %v54 = vld [vmem:[#allocation2 + $0x8] sm:$0xff]
    %v55 = vld [vmem:[#allocation3] sm:$0xf]
    %v56 = vld [vmem:[#allocation3 + $0x4] sm:$0xf]
    %v57 = vld [vmem:[#allocation6] sm:$0xf]
    %v58 = vld [vmem:[#allocation6 + $0x4] sm:$0xf]
    %v59 = vld [vmem:[#allocation6 + $0x8] sm:$0xf]
    %v60 = vld [vmem:[#allocation6 + $0xc] sm:$0xf]
    %v61 = vld [vmem:[#allocation6 + $0x10] sm:$0xf]
    %v62 = vld [vmem:[#allocation6 + $0x14] sm:$0xf]
    %v63 = vld [vmem:[#allocation6 + $0x18] sm:$0xf]
    %v64 = vld [vmem:[#allocation6 + $0x1c] sm:$0xf]
    %v65 = vld [vmem:[#allocation6 + $0x20] sm:$0xf]
    %v66 = vld [vmem:[#allocation6 + $0x24] sm:$0xf]
    %v67 = vld [vmem:[#allocation6 + $0x28] sm:$0xf]
    %v68 = vld [vmem:[#allocation6 + $0x2c] sm:$0xf]
    %v69 = vld [vmem:[#allocation6 + $0x30] sm:$0xf]
    %v70 = vld [vmem:[#allocation6 + $0x34] sm:$0xf]
    %v71 = vld [vmem:[#allocation6 + $0x38] sm:$0xf]
    %v72 = vld [vmem:[#allocation6 + $0x3c] sm:$0xf]
    %v75 = vunpack.c.l.b16 %v55
    %v76 = vunpack.c.l.b16 %v56
    %v77 = vpack.c.b16 %v76, %v75
    %v95 = vunpack.c.l.b16 %v57
    %v96 = vunpack.c.l.b16 %v58
    %v97 = vunpack.c.l.b16 %v59
    %v98 = vunpack.c.l.b16 %v60
    %v99 = vunpack.c.l.b16 %v61
    %v100 = vunpack.c.l.b16 %v62
    %v101 = vunpack.c.l.b16 %v63
    %v102 = vunpack.c.l.b16 %v64
    %v103 = vunpack.c.l.b16 %v65
    %v104 = vunpack.c.l.b16 %v66
    %v105 = vunpack.c.l.b16 %v67
    %v106 = vunpack.c.l.b16 %v68
    %v107 = vunpack.c.l.b16 %v69
    %v108 = vunpack.c.l.b16 %v70
    %v109 = vunpack.c.l.b16 %v71
    %v110 = vunpack.c.l.b16 %v72
    %v111 = vpack.c.b16 %v96, %v95
    %v112 = vpack.c.b16 %v98, %v97
    %v113 = vpack.c.b16 %v100, %v99
    %v114 = vpack.c.b16 %v102, %v101
    %v115 = vpack.c.b16 %v104, %v103
    %v116 = vpack.c.b16 %v106, %v105
    %v117 = vpack.c.b16 %v108, %v107
    %v118 = vpack.c.b16 %v110, %v109
    %127 = vmatpush.bf16.msra.mxu0 %v118
    %128 = vmatpush.bf16.msra.mxu0 %v117
    %129 = vmatpush.bf16.msra.mxu0 %v116
    %130 = vmatpush.bf16.msra.mxu0 %v115
    %131 = vmatpush.bf16.msra.mxu0 %v114
    %132 = vmatpush.bf16.msra.mxu0 %v113
    %133 = vmatpush.bf16.msra.mxu0 %v112
    %134 = vmatpush.bf16.msra.mxu0 %v111
    %135 = vmatmul.bf16.gmra.mxu0 %v77
    %v136 = vpop.f32.mrf.mxu0
    %v137 = vadd.f32 0.0, %v136
    %v138 = vpop.f32.mrf.mxu0
    %v139 = vadd.f32 0.0, %v138
    %140 = vdwg.mxu0
    %v141 = vadd.f32 %v53, %v137
    %v142 = vadd.f32 %v54, %v139
    %143 = vst [vmem:[#allocation2] sm:$0xff] %v141
    %144 = vst [vmem:[#allocation2 + $0x8] sm:$0xff] %v142
    // Predicated region
    $region26: #{tpu_custom_call.1} parent=1 // pred_check
      %p145 = pneg %p47
    $region27: #{tpu_custom_call.1} parent=1 // pred_check_branch
      %147 = sbr.rel (%p145) target = $region29
    $region28: #{tpu_custom_call.1} parent=1 // pred_region
      %v148 = vld [vmem:[#allocation2] sm:$0xff]
      %v149 = vld [vmem:[#allocation2 + $0x8] sm:$0xff]
      %v150 = vld [vmem:[%s2] sm:$0x1]
      %v152 = vperm.slane %v150, 0
      %v154 = vadd.f32 %v148, %v152
      %v155 = vadd.f32 %v149, %v152
      %156 = vst [vmem:[#allocation8] sm:$0xff] %v154
      %157 = vst [vmem:[#allocation8 + $0x8] sm:$0xff] %v155
    $region29: #{tpu_custom_call.1} parent=1 // pred_fallthru
      _
    // Predicated region
    $region30: #{tpu_custom_call.1} parent=1 // pred_check
      _
    $region31: #{tpu_custom_call.1} parent=1 // pred_check_branch
      %159 = sbr.rel (0) target = $region33
    $region32: #{tpu_custom_call.1} parent=1 // pred_region
      %161 = vsyncadd [#allocation5], 0
      %s162 = sshll.u32 [#allocation8], 4
      %s163 = int_to_ptr.vmem [resolvable:$true] %s162
      %s164 = sshll.u32 %s3, 4
      %s165 = int_to_ptr.hbm [resolvable:$true] %s164
      %170 = dma.vmem_to_hbm [thread:$0]  %s163, 256, %s165, [#allocation5], 128, 128, 8
    $region33: #{tpu_custom_call.1} parent=1 // pred_fallthru
      _
    // Predicated region
    $region34: #{tpu_custom_call.1} parent=1 // pred_check
      _
    $region35: #{tpu_custom_call.1} parent=1 // pred_check_branch
      %172 = sbr.rel (0) target = $region37
    $region36: #{tpu_custom_call.1} parent=1 // pred_region
      %174 = dma.done [#allocation5], 256
    $region37: #{tpu_custom_call.1} parent=1 // pred_fallthru
      _
    %175 = vsyncpa [#allocation4], 1
    %176 = vsyncpa [#allocation7], 1
    %177 = vsyncpa [#allocation5], 1

</llo_original>
